<compile_context>
chip_gen: v5e
topology: v5e:2x2
jax: 0.10.0
libtpu: 0.0.40
codegen_flags: <defaults>
</compile_context>

<pallas_src>
import jax
import jax.numpy as jnp
from jax.experimental import pallas as pl
from jax.experimental.pallas import tpu as pltpu

EPS = 1e-5
LANE = 128  # TPU lane width — pad every feature dim to a multiple of this.


def _round_up(n, m=LANE):
    return ((n + m - 1) // m) * m


def _bn_relu(h, gamma, beta):
    """Fused BatchNorm1d (training-mode batch stats, biased var) + ReLU.

    One cross-sublane (XLU) reduction: reduce concat([h, h*h]) once, then
    var = E[h^2] - E[h]^2.  Affine folded into a single scale/shift.
    Elementwise math kept in f32.
    """
    f = h.shape[-1]
    stats = jnp.mean(jnp.concatenate([h, h * h], axis=-1), axis=0, keepdims=True)
    mu = stats[:, :f]
    var = stats[:, f:] - mu * mu                      # biased variance (PyTorch BN)
    scale = gamma * jax.lax.rsqrt(var + EPS)
    shift = beta - mu * scale
    return jnp.maximum(h * scale + shift, 0.0)


def _batch_net_kernel(x_ref,
                      w1_ref, b1_ref, g1_ref, be1_ref,
                      w2_ref, b2_ref, g2_ref, be2_ref,
                      w3_ref, b3_ref,
                      out_ref):
    # ---- layer 1: Linear (bf16 operands, f32 acc) -> BN -> ReLU ----
    x = x_ref[...].astype(jnp.bfloat16)
    h1 = jnp.dot(x, w1_ref[...], preferred_element_type=jnp.float32) + b1_ref[...]
    h1 = _bn_relu(h1, g1_ref[...], be1_ref[...])

    # ---- layer 2: Linear -> BN -> ReLU ----
    h2 = (jnp.dot(h1.astype(jnp.bfloat16), w2_ref[...],
                  preferred_element_type=jnp.float32) + b2_ref[...])
    h2 = _bn_relu(h2, g2_ref[...], be2_ref[...])

    # ---- layer 3: Linear ----
    out = (jnp.dot(h2.astype(jnp.bfloat16), w3_ref[...],
                   preferred_element_type=jnp.float32) + b3_ref[...])
    out_ref[...] = out.astype(out_ref.dtype)


def _vmem_spec(shape):
    nd = len(shape)  # bind rank eagerly — no late-binding closure bug
    return pl.BlockSpec(shape, lambda nd=nd: (0,) * nd, memory_space=pltpu.VMEM)


def _pad2(a, rows, cols):
    r, c = a.shape
    return jnp.pad(a, ((0, rows - r), (0, cols - c)))


def batch_net_forward(x, params):
    """x: (B, in_dim) f32.  params: unpadded dict from init_params."""
    B, in_dim = x.shape
    h1d = params["w1"].shape[1]
    h2d = params["w2"].shape[1]
    out_dim = params["w3"].shape[1]
    in_p, h1p, h2p, out_p = (_round_up(d) for d in (in_dim, h1d, h2d, out_dim))

    # Lane-dense, zero-padded operands (weights pre-cast to bf16 for the MXU).
    xp  = _pad2(x, B, in_p)
    w1  = _pad2(params["w1"], in_p, h1p).astype(jnp.bfloat16)
    w2  = _pad2(params["w2"], h1p, h2p).astype(jnp.bfloat16)
    w3  = _pad2(params["w3"], h2p, out_p).astype(jnp.bfloat16)
    b1  = _pad2(params["b1"][None, :], 1, h1p)
    b2  = _pad2(params["b2"][None, :], 1, h2p)
    b3  = _pad2(params["b3"][None, :], 1, out_p)
    g1  = _pad2(params["g1"][None, :], 1, h1p)
    be1 = _pad2(params["be1"][None, :], 1, h1p)
    g2  = _pad2(params["g2"][None, :], 1, h2p)
    be2 = _pad2(params["be2"][None, :], 1, h2p)

    args = (xp, w1, b1, g1, be1, w2, b2, g2, be2, w3, b3)

    out_padded = pl.pallas_call(
        _batch_net_kernel,
        out_shape=jax.ShapeDtypeStruct((B, out_p), jnp.float32),
        grid=(),
        in_specs=[_vmem_spec(a.shape) for a in args],
        out_specs=_vmem_spec((B, out_p)),
    )(*args)

    return out_padded[:, :out_dim]


def init_params(key, in_dim, n_hidden_1, n_hidden_2, out_dim):
    """Deterministic synthetic parameters, shapes matching the PyTorch module.
    Linear weights stored pre-transposed as (in_features, out_features)."""
    ks = jax.random.split(key, 3)

    def lin(k, fan_in, fan_out):
        bound = 1.0 / (fan_in ** 0.5)
        kw, kb = jax.random.split(k)
        w = jax.random.uniform(kw, (fan_in, fan_out), jnp.float32, -bound, bound)
        b = jax.random.uniform(kb, (fan_out,), jnp.float32, -bound, bound)
        return w, b

    w1, b1 = lin(ks[0], in_dim, n_hidden_1)
    w2, b2 = lin(ks[1], n_hidden_1, n_hidden_2)
    w3, b3 = lin(ks[2], n_hidden_2, out_dim)

    return dict(
        w1=w1, b1=b1,
        g1=jnp.ones((n_hidden_1,), jnp.float32),
        be1=jnp.zeros((n_hidden_1,), jnp.float32),
        w2=w2, b2=b2,
        g2=jnp.ones((n_hidden_2,), jnp.float32),
        be2=jnp.zeros((n_hidden_2,), jnp.float32),
        w3=w3, b3=b3,
    )


def _reference(x, p):
    """Pure-JAX reference mirroring the kernel's numerics (bf16 dot operands,
    f32 accumulation) with canonical PyTorch BatchNorm1d training semantics."""
    def dot(a, w):
        return jnp.dot(a.astype(jnp.bfloat16), w.astype(jnp.bfloat16),
                       preferred_element_type=jnp.float32)

    def bn_relu(h, g, be):
        mu = h.mean(0, keepdims=True)
        var = ((h - mu) ** 2).mean(0, keepdims=True)   # biased variance
        return jnp.maximum((h - mu) / jnp.sqrt(var + EPS) * g + be, 0.0)

    h = bn_relu(dot(x, p["w1"]) + p["b1"], p["g1"], p["be1"])
    h = bn_relu(dot(h, p["w2"]) + p["b2"], p["g2"], p["be2"])
    return dot(h, p["w3"]) + p["b3"]


if __name__ == "__main__":
    key = jax.random.PRNGKey(0)
    kx, kp = jax.random.split(key)

    batch, in_dim, n_hidden_1, n_hidden_2, out_dim = 8, 32, 64, 32, 16
    x = jax.random.normal(kx, (batch, in_dim), jnp.float32)
    params = init_params(kp, in_dim, n_hidden_1, n_hidden_2, out_dim)

    out = batch_net_forward(x, params)
    jax.block_until_ready(out)

    ref = _reference(x, params)
    assert out.shape == (batch, out_dim)
    err = float(jnp.max(jnp.abs(out - ref)))
    assert jnp.allclose(out, ref, atol=2e-3, rtol=2e-3), f"max abs err = {err}"

    print("KERNEL_OK")
</pallas_src>

<mosaic_0001>
module attributes {stable_mosaic.version = 11 : i64} {
  func.func @_batch_net_kernel(%arg0: memref<8x128xf32, #tpu.memory_space<vmem>>, %arg1: memref<128x128xbf16, #tpu.memory_space<vmem>>, %arg2: memref<1x128xf32, #tpu.memory_space<vmem>>, %arg3: memref<1x128xf32, #tpu.memory_space<vmem>>, %arg4: memref<1x128xf32, #tpu.memory_space<vmem>>, %arg5: memref<128x128xbf16, #tpu.memory_space<vmem>>, %arg6: memref<1x128xf32, #tpu.memory_space<vmem>>, %arg7: memref<1x128xf32, #tpu.memory_space<vmem>>, %arg8: memref<1x128xf32, #tpu.memory_space<vmem>>, %arg9: memref<128x128xbf16, #tpu.memory_space<vmem>>, %arg10: memref<1x128xf32, #tpu.memory_space<vmem>>, %arg11: memref<8x128xf32, #tpu.memory_space<vmem>>) attributes {dimension_semantics = [], scalar_prefetch = 0 : i64, scratch_operands = 0 : i64, tpu.core_type = #tpu.core_type<tc>} {
    %c0 = arith.constant 0 : index
    %c0_0 = arith.constant 0 : index
    %0 = vector.load %arg0[%c0, %c0_0] : memref<8x128xf32, #tpu.memory_space<vmem>>, vector<8x128xf32>
    %1 = arith.truncf %0 : vector<8x128xf32> to vector<8x128xbf16>
    %c0_1 = arith.constant 0 : index
    %c0_2 = arith.constant 0 : index
    %2 = vector.load %arg1[%c0_1, %c0_2] : memref<128x128xbf16, #tpu.memory_space<vmem>>, vector<128x128xbf16>
    %cst = arith.constant dense<0.000000e+00> : vector<8x128xf32>
    %3 = tpu.matmul %1, %2, %cst {dimension_numbers = #tpu.dot_dimension_numbers<[1], [0], [0], [1], [0, 0, 1, 1], [], []>} : vector<8x128xbf16>, vector<128x128xbf16>, vector<8x128xf32> -> vector<8x128xf32>
    %c0_3 = arith.constant 0 : index
    %c0_4 = arith.constant 0 : index
    %4 = vector.load %arg2[%c0_3, %c0_4] : memref<1x128xf32, #tpu.memory_space<vmem>>, vector<1x128xf32>
    %5 = vector.broadcast %4 : vector<1x128xf32> to vector<8x128xf32>
    %6 = arith.addf %3, %5 : vector<8x128xf32>
    %c0_5 = arith.constant 0 : index
    %c0_6 = arith.constant 0 : index
    %7 = vector.load %arg3[%c0_5, %c0_6] : memref<1x128xf32, #tpu.memory_space<vmem>>, vector<1x128xf32>
    %c0_7 = arith.constant 0 : index
    %c0_8 = arith.constant 0 : index
    %8 = vector.load %arg4[%c0_7, %c0_8] : memref<1x128xf32, #tpu.memory_space<vmem>>, vector<1x128xf32>
    %9 = arith.mulf %6, %6 : vector<8x128xf32>
    %10 = tpu.concatenate %6, %9 in 1 : vector<8x128xf32>, vector<8x128xf32> -> vector<8x256xf32>
    %cst_9 = arith.constant dense<0.000000e+00> : vector<256xf32>
    %11 = vector.multi_reduction <add>, %10, %cst_9 [0] : vector<8x256xf32> to vector<256xf32>
    %12 = vector.shape_cast %11 : vector<256xf32> to vector<1x256xf32>
    %cst_10 = arith.constant 8.000000e+00 : f32
    %13 = vector.broadcast %cst_10 : f32 to vector<1x256xf32>
    %14 = arith.divf %12, %13 : vector<1x256xf32>
    %15 = vector.extract_strided_slice %14 {offsets = [0, 0], sizes = [1, 128], strides = [1, 1]} : vector<1x256xf32> to vector<1x128xf32>
    %16 = vector.extract_strided_slice %14 {offsets = [0, 128], sizes = [1, 128], strides = [1, 1]} : vector<1x256xf32> to vector<1x128xf32>
    %17 = arith.mulf %15, %15 : vector<1x128xf32>
    %18 = arith.subf %16, %17 : vector<1x128xf32>
    %cst_11 = arith.constant 9.99999974E-6 : f32
    %19 = vector.broadcast %cst_11 : f32 to vector<1x128xf32>
    %20 = arith.addf %18, %19 : vector<1x128xf32>
    %21 = math.rsqrt %20 : vector<1x128xf32>
    %22 = arith.mulf %7, %21 : vector<1x128xf32>
    %23 = arith.mulf %15, %22 : vector<1x128xf32>
    %24 = arith.subf %8, %23 : vector<1x128xf32>
    %25 = vector.broadcast %22 : vector<1x128xf32> to vector<8x128xf32>
    %26 = arith.mulf %6, %25 : vector<8x128xf32>
    %27 = vector.broadcast %24 : vector<1x128xf32> to vector<8x128xf32>
    %28 = arith.addf %26, %27 : vector<8x128xf32>
    %cst_12 = arith.constant 0.000000e+00 : f32
    %29 = vector.broadcast %cst_12 : f32 to vector<8x128xf32>
    %30 = arith.maximumf %28, %29 : vector<8x128xf32>
    %31 = arith.truncf %30 : vector<8x128xf32> to vector<8x128xbf16>
    %c0_13 = arith.constant 0 : index
    %c0_14 = arith.constant 0 : index
    %32 = vector.load %arg5[%c0_13, %c0_14] : memref<128x128xbf16, #tpu.memory_space<vmem>>, vector<128x128xbf16>
    %cst_15 = arith.constant dense<0.000000e+00> : vector<8x128xf32>
    %33 = tpu.matmul %31, %32, %cst_15 {dimension_numbers = #tpu.dot_dimension_numbers<[1], [0], [0], [1], [0, 0, 1, 1], [], []>} : vector<8x128xbf16>, vector<128x128xbf16>, vector<8x128xf32> -> vector<8x128xf32>
    %c0_16 = arith.constant 0 : index
    %c0_17 = arith.constant 0 : index
    %34 = vector.load %arg6[%c0_16, %c0_17] : memref<1x128xf32, #tpu.memory_space<vmem>>, vector<1x128xf32>
    %35 = vector.broadcast %34 : vector<1x128xf32> to vector<8x128xf32>
    %36 = arith.addf %33, %35 : vector<8x128xf32>
    %c0_18 = arith.constant 0 : index
    %c0_19 = arith.constant 0 : index
    %37 = vector.load %arg7[%c0_18, %c0_19] : memref<1x128xf32, #tpu.memory_space<vmem>>, vector<1x128xf32>
    %c0_20 = arith.constant 0 : index
    %c0_21 = arith.constant 0 : index
    %38 = vector.load %arg8[%c0_20, %c0_21] : memref<1x128xf32, #tpu.memory_space<vmem>>, vector<1x128xf32>
    %39 = arith.mulf %36, %36 : vector<8x128xf32>
    %40 = tpu.concatenate %36, %39 in 1 : vector<8x128xf32>, vector<8x128xf32> -> vector<8x256xf32>
    %cst_22 = arith.constant dense<0.000000e+00> : vector<256xf32>
    %41 = vector.multi_reduction <add>, %40, %cst_22 [0] : vector<8x256xf32> to vector<256xf32>
    %42 = vector.shape_cast %41 : vector<256xf32> to vector<1x256xf32>
    %cst_23 = arith.constant 8.000000e+00 : f32
    %43 = vector.broadcast %cst_23 : f32 to vector<1x256xf32>
    %44 = arith.divf %42, %43 : vector<1x256xf32>
    %45 = vector.extract_strided_slice %44 {offsets = [0, 0], sizes = [1, 128], strides = [1, 1]} : vector<1x256xf32> to vector<1x128xf32>
    %46 = vector.extract_strided_slice %44 {offsets = [0, 128], sizes = [1, 128], strides = [1, 1]} : vector<1x256xf32> to vector<1x128xf32>
    %47 = arith.mulf %45, %45 : vector<1x128xf32>
    %48 = arith.subf %46, %47 : vector<1x128xf32>
    %cst_24 = arith.constant 9.99999974E-6 : f32
    %49 = vector.broadcast %cst_24 : f32 to vector<1x128xf32>
    %50 = arith.addf %48, %49 : vector<1x128xf32>
    %51 = math.rsqrt %50 : vector<1x128xf32>
    %52 = arith.mulf %37, %51 : vector<1x128xf32>
    %53 = arith.mulf %45, %52 : vector<1x128xf32>
    %54 = arith.subf %38, %53 : vector<1x128xf32>
    %55 = vector.broadcast %52 : vector<1x128xf32> to vector<8x128xf32>
    %56 = arith.mulf %36, %55 : vector<8x128xf32>
    %57 = vector.broadcast %54 : vector<1x128xf32> to vector<8x128xf32>
    %58 = arith.addf %56, %57 : vector<8x128xf32>
    %cst_25 = arith.constant 0.000000e+00 : f32
    %59 = vector.broadcast %cst_25 : f32 to vector<8x128xf32>
    %60 = arith.maximumf %58, %59 : vector<8x128xf32>
    %61 = arith.truncf %60 : vector<8x128xf32> to vector<8x128xbf16>
    %c0_26 = arith.constant 0 : index
    %c0_27 = arith.constant 0 : index
    %62 = vector.load %arg9[%c0_26, %c0_27] : memref<128x128xbf16, #tpu.memory_space<vmem>>, vector<128x128xbf16>
    %cst_28 = arith.constant dense<0.000000e+00> : vector<8x128xf32>
    %63 = tpu.matmul %61, %62, %cst_28 {dimension_numbers = #tpu.dot_dimension_numbers<[1], [0], [0], [1], [0, 0, 1, 1], [], []>} : vector<8x128xbf16>, vector<128x128xbf16>, vector<8x128xf32> -> vector<8x128xf32>
    %c0_29 = arith.constant 0 : index
    %c0_30 = arith.constant 0 : index
    %64 = vector.load %arg10[%c0_29, %c0_30] : memref<1x128xf32, #tpu.memory_space<vmem>>, vector<1x128xf32>
    %65 = vector.broadcast %64 : vector<1x128xf32> to vector<8x128xf32>
    %66 = arith.addf %63, %65 : vector<8x128xf32>
    %c0_31 = arith.constant 0 : index
    %c0_32 = arith.constant 0 : index
    %67 = vector.load %arg11[%c0_31, %c0_32] : memref<8x128xf32, #tpu.memory_space<vmem>>, vector<8x128xf32>
    tpu.vector_store %arg11[%c0_31, %c0_32], %66 {strides = array<i32>} : memref<8x128xf32, #tpu.memory_space<vmem>>, vector<8x128xf32>,
    return
  }
}

</mosaic_0001>

<llo_original>
// kernel: tpu_custom_call.1
$region0: #{tpu_custom_call.1}
  #allocation0 [shape = 'u32[]', space=smem, size = 0x4, offset = 0x4, fixed_abs, tag = 'smem constant byte address 0x4 - core index']
  #allocation1 [shape = 'u32[72,128]{1,0:T(1,128)}', space=vmem, size = 0x9000, scoped, tag = 'internal scratch']
  %s0 = inlined_call_operand.hbm [shape: f32[8,128], index: 0, kind: input, shape index: {}]
  %s1 = inlined_call_operand.hbm [shape: bf16[128,128], index: 1, kind: input, shape index: {}]
  %s2 = inlined_call_operand.vmem [shape: f32[1,128], index: 2, kind: input, shape index: {}]
  %s3 = inlined_call_operand.vmem [shape: f32[1,128], index: 3, kind: input, shape index: {}]
  %s4 = inlined_call_operand.vmem [shape: f32[1,128], index: 4, kind: input, shape index: {}]
  %s5 = inlined_call_operand.hbm [shape: bf16[128,128], index: 5, kind: input, shape index: {}]
  %s6 = inlined_call_operand.vmem [shape: f32[1,128], index: 6, kind: input, shape index: {}]
  %s7 = inlined_call_operand.vmem [shape: f32[1,128], index: 7, kind: input, shape index: {}]
  %s8 = inlined_call_operand.vmem [shape: f32[1,128], index: 8, kind: input, shape index: {}]
  %s9 = inlined_call_operand.hbm [shape: bf16[128,128], index: 9, kind: input, shape index: {}]
  %s10 = inlined_call_operand.vmem [shape: f32[1,128], index: 10, kind: input, shape index: {}]
  %s11 = inlined_call_operand.hbm [shape: f32[8,128], index: 11, kind: output, shape index: {}]
  %s12 = sld [smem:[#allocation0]]
  $region70: #{tpu_custom_call.1} parent=0
    _
  %s14 = ssub.s32 1, %s12
  %s15 = scalar_select 0, %s14, %s12
  $region1: #{tpu_custom_call.1} parent=0
    #allocation2 [shape = 'u8[4096]{0}', space=vmem, size = 0x1000, scoped, tag = 'input window, operand 0, single buffered']
    #allocation3 [shape = 's32[1]{0}', space=sflag, size = 0x4, scoped, tag = 'scoped memory for tpu_custom_call.1']
    #allocation4 [shape = 's32[1]{0}', space=sflag, size = 0x4, scoped, tag = 'scoped memory for tpu_custom_call.1']
    #allocation5 [shape = 'u8[32768]{0}', space=vmem, size = 0x8000, scoped, tag = 'input window, operand 1, single buffered']
    #allocation6 [shape = 's32[1]{0}', space=sflag, size = 0x4, scoped, tag = 'scoped memory for tpu_custom_call.1']
    #allocation7 [shape = 'u8[32768]{0}', space=vmem, size = 0x8000, scoped, tag = 'input window, operand 5, single buffered']
    #allocation8 [shape = 'u8[32768]{0}', space=vmem, size = 0x8000, scoped, tag = 'input window, operand 9, single buffered']
    #allocation9 [shape = 's32[1]{0}', space=sflag, size = 0x4, scoped, tag = 'scoped memory for tpu_custom_call.1']
    #allocation10 [shape = 'u8[4096]{0}', space=vmem, size = 0x1000, scoped, tag = 'output window, operand 0, single buffered']
    %16 = vsyncpa [#allocation3], 0
    %17 = vsyncpa [#allocation6], 0
    %18 = vsyncpa [#allocation9], 0
    %19 = vsyncpa [#allocation4], 0
    // Predicated region
    $region2: #{tpu_custom_call.1} parent=1 // pred_check
      _
    $region3: #{tpu_custom_call.1} parent=1 // pred_check_branch
      %21 = sbr.rel (0) target = $region5
    $region4: #{tpu_custom_call.1} parent=1 // pred_region
      %23 = vsyncadd [#allocation3], 0
      %s25 = sshll.u32 %s0, 4
      %s26 = int_to_ptr.hbm [resolvable:$true] %s25
      %s27 = sshll.u32 [#allocation2], 4
      %s28 = int_to_ptr.vmem [resolvable:$true] %s27
      %30 = dma.hbm_to_vmem [thread:$0]  %s26, 128, %s28, [#allocation3]
    $region5: #{tpu_custom_call.1} parent=1 // pred_fallthru
      _
    // Predicated region
    $region6: #{tpu_custom_call.1} parent=1 // pred_check
      _
    $region7: #{tpu_custom_call.1} parent=1 // pred_check_branch
      %32 = sbr.rel (0) target = $region9
    $region8: #{tpu_custom_call.1} parent=1 // pred_region
      %34 = vsyncadd [#allocation6], 0
      %s35 = sshll.u32 %s1, 4
      %s36 = int_to_ptr.hbm [resolvable:$true] %s35
      %s37 = sshll.u32 [#allocation5], 4
      %s38 = int_to_ptr.vmem [resolvable:$true] %s37
      %43 = dma.hbm_to_vmem [thread:$0]  %s36, 1024, %s38, [#allocation6], 64, 64, 4
    $region9: #{tpu_custom_call.1} parent=1 // pred_fallthru
      _
    // Predicated region
    $region10: #{tpu_custom_call.1} parent=1 // pred_check
      _
    $region11: #{tpu_custom_call.1} parent=1 // pred_check_branch
      %45 = sbr.rel (0) target = $region13
    $region12: #{tpu_custom_call.1} parent=1 // pred_region
      _
    $region13: #{tpu_custom_call.1} parent=1 // pred_fallthru
      _
    // Predicated region
    $region14: #{tpu_custom_call.1} parent=1 // pred_check
      _
    $region15: #{tpu_custom_call.1} parent=1 // pred_check_branch
      %47 = sbr.rel (0) target = $region17
    $region16: #{tpu_custom_call.1} parent=1 // pred_region
      _
    $region17: #{tpu_custom_call.1} parent=1 // pred_fallthru
      _
    // Predicated region
    $region18: #{tpu_custom_call.1} parent=1 // pred_check
      _
    $region19: #{tpu_custom_call.1} parent=1 // pred_check_branch
      %49 = sbr.rel (0) target = $region21
    $region20: #{tpu_custom_call.1} parent=1 // pred_region
      _
    $region21: #{tpu_custom_call.1} parent=1 // pred_fallthru
      _
    // Predicated region
    $region22: #{tpu_custom_call.1} parent=1 // pred_check
      _
    $region23: #{tpu_custom_call.1} parent=1 // pred_check_branch
      %51 = sbr.rel (0) target = $region25
    $region24: #{tpu_custom_call.1} parent=1 // pred_region
      %53 = vsyncadd [#allocation6], 0
      %s54 = sshll.u32 %s5, 4
      %s55 = int_to_ptr.hbm [resolvable:$true] %s54
      %s56 = sshll.u32 [#allocation7], 4
      %s57 = int_to_ptr.vmem [resolvable:$true] %s56
      %62 = dma.hbm_to_vmem [thread:$0]  %s55, 1024, %s57, [#allocation6], 64, 64, 4
    $region25: #{tpu_custom_call.1} parent=1 // pred_fallthru
      _
    // Predicated region
    $region26: #{tpu_custom_call.1} parent=1 // pred_check
      _
    $region27: #{tpu_custom_call.1} parent=1 // pred_check_branch
      %64 = sbr.rel (0) target = $region29
    $region28: #{tpu_custom_call.1} parent=1 // pred_region
      _
    $region29: #{tpu_custom_call.1} parent=1 // pred_fallthru
      _
    // Predicated region
    $region30: #{tpu_custom_call.1} parent=1 // pred_check
      _
    $region31: #{tpu_custom_call.1} parent=1 // pred_check_branch
      %66 = sbr.rel (0) target = $region33
    $region32: #{tpu_custom_call.1} parent=1 // pred_region
      _
    $region33: #{tpu_custom_call.1} parent=1 // pred_fallthru
      _
    // Predicated region
    $region34: #{tpu_custom_call.1} parent=1 // pred_check
      _
    $region35: #{tpu_custom_call.1} parent=1 // pred_check_branch
      %68 = sbr.rel (0) target = $region37
    $region36: #{tpu_custom_call.1} parent=1 // pred_region
      _
    $region37: #{tpu_custom_call.1} parent=1 // pred_fallthru
      _
    // Predicated region
    $region38: #{tpu_custom_call.1} parent=1 // pred_check
      _
    $region39: #{tpu_custom_call.1} parent=1 // pred_check_branch
      %70 = sbr.rel (0) target = $region41
    $region40: #{tpu_custom_call.1} parent=1 // pred_region
      %72 = vsyncadd [#allocation9], 0
      %s73 = sshll.u32 %s9, 4
      %s74 = int_to_ptr.hbm [resolvable:$true] %s73
      %s75 = sshll.u32 [#allocation8], 4
      %s76 = int_to_ptr.vmem [resolvable:$true] %s75
      %81 = dma.hbm_to_vmem [thread:$0]  %s74, 1024, %s76, [#allocation9], 64, 64, 4
    $region41: #{tpu_custom_call.1} parent=1 // pred_fallthru
      _
    // Predicated region
    $region42: #{tpu_custom_call.1} parent=1 // pred_check
      _
    $region43: #{tpu_custom_call.1} parent=1 // pred_check_branch
      %83 = sbr.rel (0) target = $region45
    $region44: #{tpu_custom_call.1} parent=1 // pred_region
      _
    $region45: #{tpu_custom_call.1} parent=1 // pred_fallthru
      _
    // Predicated region
    $region46: #{tpu_custom_call.1} parent=1 // pred_check
      _
    $region47: #{tpu_custom_call.1} parent=1 // pred_check_branch
      %85 = sbr.rel (0) target = $region49
    $region48: #{tpu_custom_call.1} parent=1 // pred_region
      %87 = dma.done [#allocation3], 128
    $region49: #{tpu_custom_call.1} parent=1 // pred_fallthru
      _
    // Predicated region
    $region50: #{tpu_custom_call.1} parent=1 // pred_check
      _
    $region51: #{tpu_custom_call.1} parent=1 // pred_check_branch
      %89 = sbr.rel (0) target = $region53
    $region52: #{tpu_custom_call.1} parent=1 // pred_region
      %91 = dma.done [#allocation6], 1024
    $region53: #{tpu_custom_call.1} parent=1 // pred_fallthru
      _
    // Predicated region
    $region54: #{tpu_custom_call.1} parent=1 // pred_check
      _
    $region55: #{tpu_custom_call.1} parent=1 // pred_check_branch
      %93 = sbr.rel (0) target = $region57
    $region56: #{tpu_custom_call.1} parent=1 // pred_region
      %95 = dma.done [#allocation6], 1024
    $region57: #{tpu_custom_call.1} parent=1 // pred_fallthru
      _
    // Predicated region
    $region58: #{tpu_custom_call.1} parent=1 // pred_check
      _
    $region59: #{tpu_custom_call.1} parent=1 // pred_check_branch
      %97 = sbr.rel (0) target = $region61
    $region60: #{tpu_custom_call.1} parent=1 // pred_region
      %99 = dma.done [#allocation9], 1024
    $region61: #{tpu_custom_call.1} parent=1 // pred_fallthru
      _
    %v100 = vld [vmem:[#allocation2] sm:$0xff]
    %v101 = vpack.c.bf16 %v100, %v100
    %v102 = vld [vmem:[#allocation5] sm:$0xf]
    %v103 = vld [vmem:[#allocation5 + $0x4] sm:$0xf]
    %v104 = vld [vmem:[#allocation5 + $0x8] sm:$0xf]
    %v105 = vld [vmem:[#allocation5 + $0xc] sm:$0xf]
    %v106 = vld [vmem:[#allocation5 + $0x10] sm:$0xf]
    %v107 = vld [vmem:[#allocation5 + $0x14] sm:$0xf]
    %v108 = vld [vmem:[#allocation5 + $0x18] sm:$0xf]
    %v109 = vld [vmem:[#allocation5 + $0x1c] sm:$0xf]
    %v110 = vld [vmem:[#allocation5 + $0x20] sm:$0xf]
    %v111 = vld [vmem:[#allocation5 + $0x24] sm:$0xf]
    %v112 = vld [vmem:[#allocation5 + $0x28] sm:$0xf]
    %v113 = vld [vmem:[#allocation5 + $0x2c] sm:$0xf]
    %v114 = vld [vmem:[#allocation5 + $0x30] sm:$0xf]
    %v115 = vld [vmem:[#allocation5 + $0x34] sm:$0xf]
    %v116 = vld [vmem:[#allocation5 + $0x38] sm:$0xf]
    %v117 = vld [vmem:[#allocation5 + $0x3c] sm:$0xf]
    %v118 = vld [vmem:[%s2] sm:$0x1]
    %v120 = vperm.slane %v118, 0
    %v138 = vunpack.c.l.b16 %v102
    %v139 = vunpack.c.l.b16 %v103
    %v140 = vunpack.c.l.b16 %v104
    %v141 = vunpack.c.l.b16 %v105
    %v142 = vunpack.c.l.b16 %v106
    %v143 = vunpack.c.l.b16 %v107
    %v144 = vunpack.c.l.b16 %v108
    %v145 = vunpack.c.l.b16 %v109
    %v146 = vunpack.c.l.b16 %v110
    %v147 = vunpack.c.l.b16 %v111
    %v148 = vunpack.c.l.b16 %v112
    %v149 = vunpack.c.l.b16 %v113
    %v150 = vunpack.c.l.b16 %v114
    %v151 = vunpack.c.l.b16 %v115
    %v152 = vunpack.c.l.b16 %v116
    %v153 = vunpack.c.l.b16 %v117
    %v154 = vpack.c.b16 %v139, %v138
    %v155 = vpack.c.b16 %v141, %v140
    %v156 = vpack.c.b16 %v143, %v142
    %v157 = vpack.c.b16 %v145, %v144
    %v158 = vpack.c.b16 %v147, %v146
    %v159 = vpack.c.b16 %v149, %v148
    %v160 = vpack.c.b16 %v151, %v150
    %v161 = vpack.c.b16 %v153, %v152
    %170 = vmatpush.bf16.msra.mxu0 %v161
    %171 = vmatpush.bf16.msra.mxu0 %v160
    %172 = vmatpush.bf16.msra.mxu0 %v159
    %173 = vmatpush.bf16.msra.mxu0 %v158
    %174 = vmatpush.bf16.msra.mxu0 %v157
    %175 = vmatpush.bf16.msra.mxu0 %v156
    %176 = vmatpush.bf16.msra.mxu0 %v155
    %177 = vmatpush.bf16.msra.mxu0 %v154
    %178 = vmatmul.bf16.gmra.mxu0 %v101
    %v179 = vpop.f32.mrf.mxu0
    %v180 = vadd.f32 %v120, %v179
    %v181 = vpop.f32.mrf.mxu0
    %182 = vdwg.mxu0
    %v183 = vld [vmem:[%s3] sm:$0x1]
    %v184 = vld [vmem:[%s4] sm:$0x1]
    %v185 = vmul.f32 %v180, %v180
    %v186 = vrot.slane %v180, 4
    %v187 = vadd.f32 %v180, %v186
    %v188 = vrot.slane %v187, 2
    %v189 = vadd.f32 %v187, %v188
    %v190 = vrot.slane %v189, 1
    %v191 = vadd.f32 %v189, %v190
    %v192 = vrot.slane %v185, 4
    %v193 = vadd.f32 %v185, %v192
    %v194 = vrot.slane %v193, 2
    %v195 = vadd.f32 %v193, %v194
    %v196 = vrot.slane %v195, 1
    %v197 = vadd.f32 %v195, %v196
    %v198 = vrcp.pop 8.0
    %v199 = vmul.f32 8.0, %v198
    %v200 = vsub.f32 1.0, %v199
    %v201 = vmul.f32 %v198, %v200
    %v202 = vadd.f32 %v198, %v201
    %vm203 = vweird.f32 %v198
    %v204 = vsel %vm203, %v198, %v202
    %v205 = vmul.f32 %v191, %v204
    %v206 = vmul.f32 %v197, %v204
    %v207 = vmul.f32 %v205, %v205
    %v208 = vsub.f32 %v206, %v207
    %v209 = vadd.f32 %v208, 1e-05
    %v210 = vrsqrt.pop %v209
    %v211 = vmul.f32 %v210, %v209
    %v212 = vmul.f32 %v211, %v210
    %v213 = vmul.f32 0.5, %v212
    %v214 = vsub.f32 1.5, %v213
    %v215 = vmul.f32 %v210, %v214
    %vm216 = vweird.f32 %v209
    %vm217 = vweird.f32 %v210
    %vm218 = vmor %vm216, %vm217
    %v219 = vsel %vm218, %v210, %v215
    %v220 = vmul.f32 %v183, %v219
    %v221 = vmul.f32 %v205, %v220
    %v222 = vsub.f32 %v184, %v221
    %v224 = vperm.slane %v220, 0
    %v226 = vmul.f32 %v180, %v224
    %v228 = vperm.slane %v222, 0
    %v230 = vadd.f32 %v226, %v228
    %v231 = vmax.f32 %v230, 0.0
    %v232 = vpack.c.bf16 %v231, %v231
    %v233 = vld [vmem:[#allocation7] sm:$0xf]
    %v234 = vld [vmem:[#allocation7 + $0x4] sm:$0xf]
    %v235 = vld [vmem:[#allocation7 + $0x8] sm:$0xf]
    %v236 = vld [vmem:[#allocation7 + $0xc] sm:$0xf]
    %v237 = vld [vmem:[#allocation7 + $0x10] sm:$0xf]
    %v238 = vld [vmem:[#allocation7 + $0x14] sm:$0xf]
    %v239 = vld [vmem:[#allocation7 + $0x18] sm:$0xf]
    %v240 = vld [vmem:[#allocation7 + $0x1c] sm:$0xf]
    %v241 = vld [vmem:[#allocation7 + $0x20] sm:$0xf]
    %v242 = vld [vmem:[#allocation7 + $0x24] sm:$0xf]
    %v243 = vld [vmem:[#allocation7 + $0x28] sm:$0xf]
    %v244 = vld [vmem:[#allocation7 + $0x2c] sm:$0xf]
    %v245 = vld [vmem:[#allocation7 + $0x30] sm:$0xf]
    %v246 = vld [vmem:[#allocation7 + $0x34] sm:$0xf]
    %v247 = vld [vmem:[#allocation7 + $0x38] sm:$0xf]
    %v248 = vld [vmem:[#allocation7 + $0x3c] sm:$0xf]
    %v249 = vld [vmem:[%s6] sm:$0x1]
    %v251 = vperm.slane %v249, 0
    %v269 = vunpack.c.l.b16 %v233
    %v270 = vunpack.c.l.b16 %v234
    %v271 = vunpack.c.l.b16 %v235
    %v272 = vunpack.c.l.b16 %v236
    %v273 = vunpack.c.l.b16 %v237
    %v274 = vunpack.c.l.b16 %v238
    %v275 = vunpack.c.l.b16 %v239
    %v276 = vunpack.c.l.b16 %v240
    %v277 = vunpack.c.l.b16 %v241
    %v278 = vunpack.c.l.b16 %v242
    %v279 = vunpack.c.l.b16 %v243
    %v280 = vunpack.c.l.b16 %v244
    %v281 = vunpack.c.l.b16 %v245
    %v282 = vunpack.c.l.b16 %v246
    %v283 = vunpack.c.l.b16 %v247
    %v284 = vunpack.c.l.b16 %v248
    %v285 = vpack.c.b16 %v270, %v269
    %v286 = vpack.c.b16 %v272, %v271
    %v287 = vpack.c.b16 %v274, %v273
    %v288 = vpack.c.b16 %v276, %v275
    %v289 = vpack.c.b16 %v278, %v277
    %v290 = vpack.c.b16 %v280, %v279
    %v291 = vpack.c.b16 %v282, %v281
    %v292 = vpack.c.b16 %v284, %v283
    %301 = vmatpush.bf16.msra.mxu0 %v292
    %302 = vmatpush.bf16.msra.mxu0 %v291
    %303 = vmatpush.bf16.msra.mxu0 %v290
    %304 = vmatpush.bf16.msra.mxu0 %v289
    %305 = vmatpush.bf16.msra.mxu0 %v288
    %306 = vmatpush.bf16.msra.mxu0 %v287
    %307 = vmatpush.bf16.msra.mxu0 %v286
    %308 = vmatpush.bf16.msra.mxu0 %v285
    %309 = vmatmul.bf16.gmra.mxu0 %v232
    %v310 = vpop.f32.mrf.mxu0
    %v311 = vadd.f32 %v251, %v310
    %v312 = vpop.f32.mrf.mxu0
    %313 = vdwg.mxu0
    %v314 = vld [vmem:[%s7] sm:$0x1]
    %v315 = vld [vmem:[%s8] sm:$0x1]
    %v316 = vmul.f32 %v311, %v311
    %v317 = vrot.slane %v311, 4
    %v318 = vadd.f32 %v311, %v317
    %v319 = vrot.slane %v318, 2
    %v320 = vadd.f32 %v318, %v319
    %v321 = vrot.slane %v320, 1
    %v322 = vadd.f32 %v320, %v321
    %v323 = vrot.slane %v316, 4
    %v324 = vadd.f32 %v316, %v323
    %v325 = vrot.slane %v324, 2
    %v326 = vadd.f32 %v324, %v325
    %v327 = vrot.slane %v326, 1
    %v328 = vadd.f32 %v326, %v327
    %v329 = vmul.f32 %v322, %v204
    %v330 = vmul.f32 %v328, %v204
    %v331 = vmul.f32 %v329, %v329
    %v332 = vsub.f32 %v330, %v331
    %v333 = vadd.f32 %v332, 1e-05
    %v334 = vrsqrt.pop %v333
    %v335 = vmul.f32 %v334, %v333
    %v336 = vmul.f32 %v335, %v334
    %v337 = vmul.f32 0.5, %v336
    %v338 = vsub.f32 1.5, %v337
    %v339 = vmul.f32 %v334, %v338
    %vm340 = vweird.f32 %v333
    %vm341 = vweird.f32 %v334
    %vm342 = vmor %vm340, %vm341
    %v343 = vsel %vm342, %v334, %v339
    %v344 = vmul.f32 %v314, %v343
    %v345 = vmul.f32 %v329, %v344
    %v346 = vsub.f32 %v315, %v345
    %v348 = vperm.slane %v344, 0
    %v350 = vmul.f32 %v311, %v348
    %v352 = vperm.slane %v346, 0
    %v354 = vadd.f32 %v350, %v352
    %v355 = vmax.f32 %v354, 0.0
    %v356 = vpack.c.bf16 %v355, %v355
    %v357 = vld [vmem:[#allocation8] sm:$0xf]
    %v358 = vld [vmem:[#allocation8 + $0x4] sm:$0xf]
    %v359 = vld [vmem:[#allocation8 + $0x8] sm:$0xf]
    %v360 = vld [vmem:[#allocation8 + $0xc] sm:$0xf]
    %v361 = vld [vmem:[#allocation8 + $0x10] sm:$0xf]
    %v362 = vld [vmem:[#allocation8 + $0x14] sm:$0xf]
    %v363 = vld [vmem:[#allocation8 + $0x18] sm:$0xf]
    %v364 = vld [vmem:[#allocation8 + $0x1c] sm:$0xf]
    %v365 = vld [vmem:[#allocation8 + $0x20] sm:$0xf]
    %v366 = vld [vmem:[#allocation8 + $0x24] sm:$0xf]
    %v367 = vld [vmem:[#allocation8 + $0x28] sm:$0xf]
    %v368 = vld [vmem:[#allocation8 + $0x2c] sm:$0xf]
    %v369 = vld [vmem:[#allocation8 + $0x30] sm:$0xf]
    %v370 = vld [vmem:[#allocation8 + $0x34] sm:$0xf]
    %v371 = vld [vmem:[#allocation8 + $0x38] sm:$0xf]
    %v372 = vld [vmem:[#allocation8 + $0x3c] sm:$0xf]
    %v373 = vld [vmem:[%s10] sm:$0x1]
    %v375 = vperm.slane %v373, 0
    %v393 = vunpack.c.l.b16 %v357
    %v394 = vunpack.c.l.b16 %v358
    %v395 = vunpack.c.l.b16 %v359
    %v396 = vunpack.c.l.b16 %v360
    %v397 = vunpack.c.l.b16 %v361
    %v398 = vunpack.c.l.b16 %v362
    %v399 = vunpack.c.l.b16 %v363
    %v400 = vunpack.c.l.b16 %v364
    %v401 = vunpack.c.l.b16 %v365
    %v402 = vunpack.c.l.b16 %v366
    %v403 = vunpack.c.l.b16 %v367
    %v404 = vunpack.c.l.b16 %v368
    %v405 = vunpack.c.l.b16 %v369
    %v406 = vunpack.c.l.b16 %v370
    %v407 = vunpack.c.l.b16 %v371
    %v408 = vunpack.c.l.b16 %v372
    %v409 = vpack.c.b16 %v394, %v393
    %v410 = vpack.c.b16 %v396, %v395
    %v411 = vpack.c.b16 %v398, %v397
    %v412 = vpack.c.b16 %v400, %v399
    %v413 = vpack.c.b16 %v402, %v401
    %v414 = vpack.c.b16 %v404, %v403
    %v415 = vpack.c.b16 %v406, %v405
    %v416 = vpack.c.b16 %v408, %v407
    %425 = vmatpush.bf16.msra.mxu0 %v416
    %426 = vmatpush.bf16.msra.mxu0 %v415
    %427 = vmatpush.bf16.msra.mxu0 %v414
    %428 = vmatpush.bf16.msra.mxu0 %v413
    %429 = vmatpush.bf16.msra.mxu0 %v412
    %430 = vmatpush.bf16.msra.mxu0 %v411
    %431 = vmatpush.bf16.msra.mxu0 %v410
    %432 = vmatpush.bf16.msra.mxu0 %v409
    %433 = vmatmul.bf16.gmra.mxu0 %v356
    %v434 = vpop.f32.mrf.mxu0
    %v435 = vadd.f32 %v375, %v434
    %v436 = vpop.f32.mrf.mxu0
    %437 = vdwg.mxu0
    %438 = vst [vmem:[#allocation10] sm:$0xff] %v435
    // Predicated region
    $region62: #{tpu_custom_call.1} parent=1 // pred_check
      _
    $region63: #{tpu_custom_call.1} parent=1 // pred_check_branch
      %440 = sbr.rel (0) target = $region65
    $region64: #{tpu_custom_call.1} parent=1 // pred_region
      %442 = vsyncadd [#allocation4], 0
      %s444 = sshll.u32 [#allocation10], 4
      %s445 = int_to_ptr.vmem [resolvable:$true] %s444
      %s446 = sshll.u32 %s11, 4
      %s447 = int_to_ptr.hbm [resolvable:$true] %s446
      %449 = dma.vmem_to_hbm [thread:$0]  %s445, 128, %s447, [#allocation4]
    $region65: #{tpu_custom_call.1} parent=1 // pred_fallthru
      _
    // Predicated region
    $region66: #{tpu_custom_call.1} parent=1 // pred_check
      _
    $region67: #{tpu_custom_call.1} parent=1 // pred_check_branch
      %451 = sbr.rel (0) target = $region69
    $region68: #{tpu_custom_call.1} parent=1 // pred_region
      %453 = dma.done [#allocation4], 128
    $region69: #{tpu_custom_call.1} parent=1 // pred_fallthru
      _
    %454 = vsyncpa [#allocation3], 1
    %455 = vsyncpa [#allocation6], 1
    %456 = vsyncpa [#allocation9], 1
    %457 = vsyncpa [#allocation4], 1

</llo_original>
